<compile_context>
chip_gen: v7x
topology: tpu7x:2x2x1
jax: 0.10.0
libtpu: 0.0.40
codegen_flags: <defaults>
</compile_context>

<pallas_src>
import jax
import jax.numpy as jnp
from jax.experimental import pallas as pl
from jax.experimental.pallas import tpu as pltpu


# ----------------------------------------------------------------------------
# Projection kernels (nn.Linear, bias=False; weights pre-transposed to [in,out])
# ----------------------------------------------------------------------------
def _linear_kernel(x_ref, w_ref, o_ref):
    o_ref[...] = jnp.dot(
        x_ref[...], w_ref[...], preferred_element_type=jnp.float32
    ).astype(o_ref.dtype)


def _linear(x2d, w_t, *, row_tile=256):
    """y = x2d @ w_t, tiled over rows so VMEM stays bounded and DMA pipelines."""
    n, d_in = x2d.shape
    d_out = w_t.shape[1]
    tr = n if n <= row_tile else row_tile
    grid = (pl.cdiv(n, tr),)
    return pl.pallas_call(
        _linear_kernel,
        out_shape=jax.ShapeDtypeStruct((n, d_out), x2d.dtype),
        grid=grid,
        in_specs=[
            pl.BlockSpec((tr, d_in), lambda r: (r, 0)),
            pl.BlockSpec((d_in, d_out), lambda r: (0, 0)),
        ],
        out_specs=pl.BlockSpec((tr, d_out), lambda r: (r, 0)),
        compiler_params=pltpu.CompilerParams(dimension_semantics=("parallel",)),
        cost_estimate=pl.CostEstimate(
            flops=2 * n * d_in * d_out,
            transcendentals=0,
            bytes_accessed=4 * (n * d_in + d_in * d_out + n * d_out),
        ),
    )(x2d, w_t)


def _qkv_kernel(q_ref, k_ref, v_ref, wq_ref, wk_ref, wv_ref,
                qo_ref, ko_ref, vo_ref):
    """All three projections in one kernel => one pallas_call launch."""
    qo_ref[...] = jnp.dot(
        q_ref[...], wq_ref[...], preferred_element_type=jnp.float32
    ).astype(qo_ref.dtype)
    ko_ref[...] = jnp.dot(
        k_ref[...], wk_ref[...], preferred_element_type=jnp.float32
    ).astype(ko_ref.dtype)
    vo_ref[...] = jnp.dot(
        v_ref[...], wv_ref[...], preferred_element_type=jnp.float32
    ).astype(vo_ref.dtype)


def _project_qkv_fused(q2d, k2d, v2d, wq_t, wk_t, wv_t, *, row_tile=256):
    """Fused Q/K/V projections (requires equal row counts, i.e. slq == sl)."""
    n, qd = q2d.shape
    kd = k2d.shape[1]
    vd = v2d.shape[1]
    hd = wq_t.shape[1]
    tr = n if n <= row_tile else row_tile
    grid = (pl.cdiv(n, tr),)

    def row_spec(d):
        return pl.BlockSpec((tr, d), lambda r: (r, 0))

    def w_spec(d):
        return pl.BlockSpec((d, hd), lambda r: (0, 0))

    out_sds = jax.ShapeDtypeStruct((n, hd), q2d.dtype)
    return pl.pallas_call(
        _qkv_kernel,
        out_shape=(out_sds, out_sds, out_sds),
        grid=grid,
        in_specs=[row_spec(qd), row_spec(kd), row_spec(vd),
                  w_spec(qd), w_spec(kd), w_spec(vd)],
        out_specs=(row_spec(hd), row_spec(hd), row_spec(hd)),
        compiler_params=pltpu.CompilerParams(dimension_semantics=("parallel",)),
        cost_estimate=pl.CostEstimate(
            flops=2 * n * (qd + kd + vd) * hd,
            transcendentals=0,
            bytes_accessed=4 * (n * (qd + kd + vd)
                                + (qd + kd + vd) * hd
                                + 3 * n * hd),
        ),
    )(q2d, k2d, v2d, wq_t, wk_t, wv_t)


# ----------------------------------------------------------------------------
# Attention kernel: one batch element per grid step, all heads inside the step
# ----------------------------------------------------------------------------
def _attn_kernel(q_ref, k_ref, v_ref, o_ref):
    """q_ref: (slq, 1, H, D); k_ref/v_ref: (sl, 1, H, D); o_ref: (slq, 1, H, D).

    All heads are processed inside one grid step (static unroll) so the
    per-grid-step overhead is amortized by H. Strided ref indexing pulls the
    per-head (seq, D) tiles directly, so no transposed copies are ever made.
    """
    num_heads = q_ref.shape[2]
    for h in range(num_heads):                     # static Python unroll
        qh = q_ref[:, 0, h, :]                     # (slq, D)
        kh = k_ref[:, 0, h, :]                     # (sl,  D)
        vh = v_ref[:, 0, h, :]                     # (sl,  D)

        # scores = q @ k.T  (NO /sqrt(nhid): reference defines scale, never uses it)
        s = jax.lax.dot_general(
            qh, kh, (((1,), (1,)), ((), ())), preferred_element_type=jnp.float32
        )                                          # (slq, sl)

        # numerically stable softmax; reciprocal goes to the (otherwise idle) EUP
        m = jnp.max(s, axis=-1, keepdims=True)
        e = jnp.exp(s - m)
        w = e * pl.reciprocal(jnp.sum(e, axis=-1, keepdims=True), approx=True)

        o = jnp.dot(w.astype(vh.dtype), vh, preferred_element_type=jnp.float32)
        o_ref[:, 0, h, :] = o.astype(o_ref.dtype)


def _attention(q4, k4, v4):
    """q4: [slq, bs, H, D]; k4/v4: [sl, bs, H, D] -> [slq, bs, H, D].

    The seq-major projection layout is consumed directly via the BlockSpec
    index_map (one batch column per grid step) and the output is written back
    in the final slq-major layout — zero HBM relayouts around this kernel.
    """
    # TODO(synk): for long `sl`, add a KV grid axis with online-softmax
    # (flash-style) accumulation in VMEM scratch so resident KV tiles stay
    # under v7x's 64 MiB VMEM; full-sl KV blocks are fine at these shapes.
    slq, bs, H, D = q4.shape
    sl = k4.shape[0]
    return pl.pallas_call(
        _attn_kernel,
        out_shape=jax.ShapeDtypeStruct((slq, bs, H, D), q4.dtype),
        grid=(bs,),
        in_specs=[
            pl.BlockSpec((slq, 1, H, D), lambda b: (0, b, 0, 0)),
            pl.BlockSpec((sl, 1, H, D), lambda b: (0, b, 0, 0)),
            pl.BlockSpec((sl, 1, H, D), lambda b: (0, b, 0, 0)),
        ],
        out_specs=pl.BlockSpec((slq, 1, H, D), lambda b: (0, b, 0, 0)),
        compiler_params=pltpu.CompilerParams(dimension_semantics=("parallel",)),
        cost_estimate=pl.CostEstimate(
            flops=4 * bs * H * slq * sl * D,
            transcendentals=bs * H * slq * sl,
            bytes_accessed=4 * (2 * slq * bs * H * D + 2 * sl * bs * H * D),
        ),
    )(q4, k4, v4)


# ----------------------------------------------------------------------------
# Module wrapper
# ----------------------------------------------------------------------------
class MultiHeadAttentionPallas:
    def __init__(self, num_heads, nhid, keys_dim, query_dim, values_dim,
                 dropout=0.0, out_dim=None, key=None):
        assert dropout == 0.0, "dropout=0.0 disables nn.Dropout in the reference"
        self.num_heads = num_heads
        self.nhid = nhid
        self.linear_out_dim = nhid * num_heads
        self.out_dim = self.linear_out_dim if out_dim is None else out_dim

        key = jax.random.PRNGKey(0) if key is None else key
        k1, k2, k3, k4 = jax.random.split(key, 4)

        # PyTorch nn.Linear stores W as [out, in]; pre-transpose ONCE to [in, out]
        # so no per-call weight transpose / HBM relayout happens in forward.
        def init_t(k, in_f, out_f):
            w = jax.random.normal(k, (out_f, in_f), jnp.float32) * 0.05
            return jnp.asarray(w.T)                         # [in, out]

        self.wk_t = init_t(k1, keys_dim, self.linear_out_dim)
        self.wq_t = init_t(k2, query_dim, self.linear_out_dim)
        self.wv_t = init_t(k3, values_dim, self.linear_out_dim)
        self.w_out_t = init_t(k4, self.linear_out_dim, self.out_dim)

    def __call__(self, query, keys, values, mask=None):
        # TODO(synk): optional `mask` (masked_fill(mask==0, -1e20)) not wired in.
        assert mask is None, "mask is not supported by the Pallas kernel"
        sl, bs, _ = keys.shape
        slq = query.shape[0]
        H, D = self.num_heads, self.nhid

        q2d = query.reshape(slq * bs, -1)
        k2d = keys.reshape(sl * bs, -1)
        v2d = values.reshape(sl * bs, -1)

        if slq == sl:
            # Single pallas_call for all three projections (1x launch / pipeline
            # startup instead of 3x).
            q_p, k_p, v_p = _project_qkv_fused(
                q2d, k2d, v2d, self.wq_t, self.wk_t, self.wv_t)
        else:
            q_p = _linear(q2d, self.wq_t)
            k_p = _linear(k2d, self.wk_t)
            v_p = _linear(v2d, self.wv_t)

        # Free views (no HBM relayout): (seq*bs, H*D) -> (seq, bs, H, D).
        # The torch permutes to [bs, H, seq, D] are folded into the attention
        # kernel's BlockSpec index_map + in-kernel head indexing instead.
        q4 = q_p.reshape(slq, bs, H, D)
        k4 = k_p.reshape(sl, bs, H, D)
        v4 = v_p.reshape(sl, bs, H, D)

        attn = _attention(q4, k4, v4)               # [slq, bs, H, D]
        attn2d = attn.reshape(slq * bs, H * D)      # free view; already slq-major

        out = _linear(attn2d, self.w_out_t)
        out = out.reshape(slq, bs, self.out_dim)
        assert out.shape == (slq, bs, self.out_dim)
        return out


# ----------------------------------------------------------------------------
# Pure-JAX reference for verification
# ----------------------------------------------------------------------------
def _reference(mod, query, keys, values):
    sl, bs, _ = keys.shape
    slq = query.shape[0]
    H, D = mod.num_heads, mod.nhid
    qp = (query @ mod.wq_t).reshape(slq, bs, H, D).transpose(1, 2, 0, 3)
    kp = (keys @ mod.wk_t).reshape(sl, bs, H, D).transpose(1, 2, 3, 0)
    vp = (values @ mod.wv_t).reshape(sl, bs, H, D).transpose(1, 2, 0, 3)
    scores = qp @ kp                                 # no /scale: matches module
    weights = jax.nn.softmax(scores, axis=-1)
    attn = (weights @ vp).transpose(2, 0, 1, 3).reshape(slq, bs, H * D)
    return attn @ mod.w_out_t


if __name__ == "__main__":
    root = jax.random.PRNGKey(0)
    kq, kk, kv, kw, kw2, kq2, kk2, kv2 = jax.random.split(root, 8)

    # Case 1: slq == sl, equal feature dims -> fused single-launch QKV path.
    num_heads, nhid = 4, 16
    keys_dim = query_dim = values_dim = 32
    slq, sl, bs = 8, 8, 2

    query = jax.random.normal(kq, (slq, bs, query_dim), jnp.float32)
    keys = jax.random.normal(kk, (sl, bs, keys_dim), jnp.float32)
    values = jax.random.normal(kv, (sl, bs, values_dim), jnp.float32)

    mha = MultiHeadAttentionPallas(num_heads, nhid, keys_dim, query_dim,
                                   values_dim, dropout=0.0, key=kw)
    out = jax.block_until_ready(mha(query, keys, values))
    ref = _reference(mha, query, keys, values)
    assert out.shape == (slq, bs, num_heads * nhid)
    assert jnp.allclose(out, ref, atol=1e-3, rtol=1e-3)

    # Case 2: cross-attention (slq != sl, different feature dims) -> fallback path.
    slq2, sl2 = 4, 8
    qd2, kd2, vd2 = 24, 32, 40
    mha2 = MultiHeadAttentionPallas(num_heads, nhid, kd2, qd2, vd2,
                                    dropout=0.0, key=kw2)
    query2 = jax.random.normal(kq2, (slq2, bs, qd2), jnp.float32)
    keys2 = jax.random.normal(kk2, (sl2, bs, kd2), jnp.float32)
    values2 = jax.random.normal(kv2, (sl2, bs, vd2), jnp.float32)
    out2 = jax.block_until_ready(mha2(query2, keys2, values2))
    ref2 = _reference(mha2, query2, keys2, values2)
    assert out2.shape == (slq2, bs, num_heads * nhid)
    assert jnp.allclose(out2, ref2, atol=1e-3, rtol=1e-3)

    print("KERNEL_OK")
</pallas_src>

<mosaic_0001>
module attributes {stable_mosaic.version = 11 : i64} {
  func.func @_qkv_kernel(%arg0: i32, %arg1: memref<16x32xf32, #tpu.memory_space<vmem>>, %arg2: memref<16x32xf32, #tpu.memory_space<vmem>>, %arg3: memref<16x32xf32, #tpu.memory_space<vmem>>, %arg4: memref<32x64xf32, #tpu.memory_space<vmem>>, %arg5: memref<32x64xf32, #tpu.memory_space<vmem>>, %arg6: memref<32x64xf32, #tpu.memory_space<vmem>>, %arg7: memref<16x64xf32, #tpu.memory_space<vmem>>, %arg8: memref<16x64xf32, #tpu.memory_space<vmem>>, %arg9: memref<16x64xf32, #tpu.memory_space<vmem>>) attributes {dimension_semantics = [#tpu.dimension_semantics<parallel>], iteration_bounds = array<i64: 1>, scalar_prefetch = 0 : i64, scratch_operands = 0 : i64, tpu.core_type = #tpu.core_type<tc>, window_params = [{transform_indices = @transform_0, window_bounds = array<i64: 16, 32>}, {transform_indices = @transform_1, window_bounds = array<i64: 16, 32>}, {transform_indices = @transform_2, window_bounds = array<i64: 16, 32>}, {pipeline_mode = #tpu.pipeline_mode<synchronous>, transform_indices = @transform_3, window_bounds = array<i64: 32, 64>}, {pipeline_mode = #tpu.pipeline_mode<synchronous>, transform_indices = @transform_4, window_bounds = array<i64: 32, 64>}, {pipeline_mode = #tpu.pipeline_mode<synchronous>, transform_indices = @transform_5, window_bounds = array<i64: 32, 64>}, {transform_indices = @transform_6, window_bounds = array<i64: 16, 64>}, {transform_indices = @transform_7, window_bounds = array<i64: 16, 64>}, {transform_indices = @transform_8, window_bounds = array<i64: 16, 64>}]} {
    %c0 = arith.constant 0 : index
    %c0_0 = arith.constant 0 : index
    %0 = vector.load %arg1[%c0, %c0_0] : memref<16x32xf32, #tpu.memory_space<vmem>>, vector<16x32xf32>
    %c0_1 = arith.constant 0 : index
    %c0_2 = arith.constant 0 : index
    %1 = vector.load %arg4[%c0_1, %c0_2] : memref<32x64xf32, #tpu.memory_space<vmem>>, vector<32x64xf32>
    %cst = arith.constant dense<0.000000e+00> : vector<16x64xf32>
    %2 = tpu.matmul %0, %1, %cst {dimension_numbers = #tpu.dot_dimension_numbers<[1], [0], [0], [1], [0, 0, 1, 1], [], []>} : vector<16x32xf32>, vector<32x64xf32>, vector<16x64xf32> -> vector<16x64xf32>
    %c0_3 = arith.constant 0 : index
    %c0_4 = arith.constant 0 : index
    %3 = vector.load %arg7[%c0_3, %c0_4] : memref<16x64xf32, #tpu.memory_space<vmem>>, vector<16x64xf32>
    tpu.vector_store %arg7[%c0_3, %c0_4], %2 {strides = array<i32>} : memref<16x64xf32, #tpu.memory_space<vmem>>, vector<16x64xf32>,
    %c0_5 = arith.constant 0 : index
    %c0_6 = arith.constant 0 : index
    %4 = vector.load %arg2[%c0_5, %c0_6] : memref<16x32xf32, #tpu.memory_space<vmem>>, vector<16x32xf32>
    %c0_7 = arith.constant 0 : index
    %c0_8 = arith.constant 0 : index
    %5 = vector.load %arg5[%c0_7, %c0_8] : memref<32x64xf32, #tpu.memory_space<vmem>>, vector<32x64xf32>
    %cst_9 = arith.constant dense<0.000000e+00> : vector<16x64xf32>
    %6 = tpu.matmul %4, %5, %cst_9 {dimension_numbers = #tpu.dot_dimension_numbers<[1], [0], [0], [1], [0, 0, 1, 1], [], []>} : vector<16x32xf32>, vector<32x64xf32>, vector<16x64xf32> -> vector<16x64xf32>
    %c0_10 = arith.constant 0 : index
    %c0_11 = arith.constant 0 : index
    %7 = vector.load %arg8[%c0_10, %c0_11] : memref<16x64xf32, #tpu.memory_space<vmem>>, vector<16x64xf32>
    tpu.vector_store %arg8[%c0_10, %c0_11], %6 {strides = array<i32>} : memref<16x64xf32, #tpu.memory_space<vmem>>, vector<16x64xf32>,
    %c0_12 = arith.constant 0 : index
    %c0_13 = arith.constant 0 : index
    %8 = vector.load %arg3[%c0_12, %c0_13] : memref<16x32xf32, #tpu.memory_space<vmem>>, vector<16x32xf32>
    %c0_14 = arith.constant 0 : index
    %c0_15 = arith.constant 0 : index
    %9 = vector.load %arg6[%c0_14, %c0_15] : memref<32x64xf32, #tpu.memory_space<vmem>>, vector<32x64xf32>
    %cst_16 = arith.constant dense<0.000000e+00> : vector<16x64xf32>
    %10 = tpu.matmul %8, %9, %cst_16 {dimension_numbers = #tpu.dot_dimension_numbers<[1], [0], [0], [1], [0, 0, 1, 1], [], []>} : vector<16x32xf32>, vector<32x64xf32>, vector<16x64xf32> -> vector<16x64xf32>
    %c0_17 = arith.constant 0 : index
    %c0_18 = arith.constant 0 : index
    %11 = vector.load %arg9[%c0_17, %c0_18] : memref<16x64xf32, #tpu.memory_space<vmem>>, vector<16x64xf32>
    tpu.vector_store %arg9[%c0_17, %c0_18], %10 {strides = array<i32>} : memref<16x64xf32, #tpu.memory_space<vmem>>, vector<16x64xf32>,
    return
  }
  func.func @transform_0(%arg0: i32) -> (i32, i32) {
    %c0_i32 = arith.constant 0 : i32
    %c0_i32_0 = arith.constant 0 : i32
    return %arg0, %c0_i32 : i32, i32
  }
  func.func @transform_1(%arg0: i32) -> (i32, i32) {
    %c0_i32 = arith.constant 0 : i32
    %c0_i32_0 = arith.constant 0 : i32
    return %arg0, %c0_i32 : i32, i32
  }
  func.func @transform_2(%arg0: i32) -> (i32, i32) {
    %c0_i32 = arith.constant 0 : i32
    %c0_i32_0 = arith.constant 0 : i32
    return %arg0, %c0_i32 : i32, i32
  }
  func.func @transform_3(%arg0: i32) -> (i32, i32) {
    %c0_i32 = arith.constant 0 : i32
    %c0_i32_0 = arith.constant 0 : i32
    %c0_i32_1 = arith.constant 0 : i32
    return %c0_i32, %c0_i32_0 : i32, i32
  }
  func.func @transform_4(%arg0: i32) -> (i32, i32) {
    %c0_i32 = arith.constant 0 : i32
    %c0_i32_0 = arith.constant 0 : i32
    %c0_i32_1 = arith.constant 0 : i32
    return %c0_i32, %c0_i32_0 : i32, i32
  }
  func.func @transform_5(%arg0: i32) -> (i32, i32) {
    %c0_i32 = arith.constant 0 : i32
    %c0_i32_0 = arith.constant 0 : i32
    %c0_i32_1 = arith.constant 0 : i32
    return %c0_i32, %c0_i32_0 : i32, i32
  }
  func.func @transform_6(%arg0: i32) -> (i32, i32) {
    %c0_i32 = arith.constant 0 : i32
    %c0_i32_0 = arith.constant 0 : i32
    return %arg0, %c0_i32 : i32, i32
  }
  func.func @transform_7(%arg0: i32) -> (i32, i32) {
    %c0_i32 = arith.constant 0 : i32
    %c0_i32_0 = arith.constant 0 : i32
    return %arg0, %c0_i32 : i32, i32
  }
  func.func @transform_8(%arg0: i32) -> (i32, i32) {
    %c0_i32 = arith.constant 0 : i32
    %c0_i32_0 = arith.constant 0 : i32
    return %arg0, %c0_i32 : i32, i32
  }
}

</mosaic_0001>

<llo_original>
// kernel: tpu_custom_call.1
$region0: #{tpu_custom_call.1}
  #allocation0 [shape = 'u32[]', space=smem, size = 0x4, offset = 0x4, fixed_abs, tag = 'smem constant byte address 0x4 - core index']
  #allocation1 [shape = 'u32[144,128]{1,0:T(1,128)}', space=vmem, size = 0x12000, scoped, tag = 'internal scratch']
  %s0 = inlined_call_operand.hbm [shape: f32[16,32], index: 0, kind: input, shape index: {}]
  %s1 = inlined_call_operand.hbm [shape: f32[16,32], index: 1, kind: input, shape index: {}]
  %s2 = inlined_call_operand.hbm [shape: f32[16,32], index: 2, kind: input, shape index: {}]
  %s3 = inlined_call_operand.hbm [shape: f32[32,64], index: 3, kind: input, shape index: {}]
  %s4 = inlined_call_operand.hbm [shape: f32[32,64], index: 4, kind: input, shape index: {}]
  %s5 = inlined_call_operand.hbm [shape: f32[32,64], index: 5, kind: input, shape index: {}]
  %s6 = inlined_call_operand.hbm [shape: f32[16,64], index: 6, kind: output, shape index: {0}]
  %s7 = inlined_call_operand.hbm [shape: f32[16,64], index: 7, kind: output, shape index: {1}]
  %s8 = inlined_call_operand.hbm [shape: f32[16,64], index: 8, kind: output, shape index: {2}]
  %9 = xla_tuple %s6, %s7, %s8
  %s10 = sld [smem:[#allocation0]]
  $region74: #{tpu_custom_call.1} parent=0
    _
  %s12 = ssub.s32 1, %s10
  %s13 = scalar_select 0, %s12, %s10
  $region1: #{tpu_custom_call.1} parent=0
    #allocation2 [shape = 'u8[8192]{0}', space=vmem, size = 0x2000, scoped, tag = 'input window, operand 0, single buffered']
    #allocation3 [shape = 's32[1]{0}', space=sflag, size = 0x4, scoped, tag = 'scoped memory for tpu_custom_call.1']
    #allocation4 [shape = 's32[1]{0}', space=sflag, size = 0x4, scoped, tag = 'scoped memory for tpu_custom_call.1']
    #allocation5 [shape = 'u8[8192]{0}', space=vmem, size = 0x2000, scoped, tag = 'input window, operand 1, single buffered']
    #allocation6 [shape = 's32[1]{0}', space=sflag, size = 0x4, scoped, tag = 'scoped memory for tpu_custom_call.1']
    #allocation7 [shape = 'u8[8192]{0}', space=vmem, size = 0x2000, scoped, tag = 'input window, operand 2, single buffered']
    #allocation8 [shape = 'u8[16384]{0}', space=vmem, size = 0x4000, scoped, tag = 'input window, operand 3, single buffered']
    #allocation9 [shape = 's32[1]{0}', space=sflag, size = 0x4, scoped, tag = 'scoped memory for tpu_custom_call.1']
    #allocation10 [shape = 'u8[16384]{0}', space=vmem, size = 0x4000, scoped, tag = 'input window, operand 4, single buffered']
    #allocation11 [shape = 'u8[16384]{0}', space=vmem, size = 0x4000, scoped, tag = 'input window, operand 5, single buffered']
    #allocation12 [shape = 's32[1]{0}', space=sflag, size = 0x4, scoped, tag = 'scoped memory for tpu_custom_call.1']
    #allocation13 [shape = 'u8[8192]{0}', space=vmem, size = 0x2000, scoped, tag = 'output window, operand 0, single buffered']
    #allocation14 [shape = 'u8[8192]{0}', space=vmem, size = 0x2000, scoped, tag = 'output window, operand 1, single buffered']
    #allocation15 [shape = 's32[1]{0}', space=sflag, size = 0x4, scoped, tag = 'scoped memory for tpu_custom_call.1']
    #allocation16 [shape = 'u8[8192]{0}', space=vmem, size = 0x2000, scoped, tag = 'output window, operand 2, single buffered']
    %14 = vsyncpa [#allocation3], 0
    %15 = vsyncpa [#allocation6], 0
    %16 = vsyncpa [#allocation9], 0
    %17 = vsyncpa [#allocation12], 0
    %18 = vsyncpa [#allocation4], 0
    %19 = vsyncpa [#allocation15], 0
    // Predicated region
    $region2: #{tpu_custom_call.1} parent=1 // pred_check
      _
    $region3: #{tpu_custom_call.1} parent=1 // pred_check_branch
      %21 = sbr.rel (0) target = $region5
    $region4: #{tpu_custom_call.1} parent=1 // pred_region
      %s23 = ssub.s32 256, 256
      %24 = vsyncadd [#allocation3], %s23
      %s25 = sshll.u32 [#allocation2], 4
      %s26 = int_to_ptr.vmem [resolvable:$true] %s25
      %31 = dma.hbm_to_vmem [thread:$0]  %s0, 256, %s26, [#allocation3], 128, 128, 8
    $region5: #{tpu_custom_call.1} parent=1 // pred_fallthru
      _
    // Predicated region
    $region6: #{tpu_custom_call.1} parent=1 // pred_check
      _
    $region7: #{tpu_custom_call.1} parent=1 // pred_check_branch
      %33 = sbr.rel (0) target = $region9
    $region8: #{tpu_custom_call.1} parent=1 // pred_region
      %s35 = ssub.s32 256, 256
      %36 = vsyncadd [#allocation6], %s35
      %s37 = sshll.u32 [#allocation5], 4
      %s38 = int_to_ptr.vmem [resolvable:$true] %s37
      %43 = dma.hbm_to_vmem [thread:$0]  %s1, 256, %s38, [#allocation6], 128, 128, 8
    $region9: #{tpu_custom_call.1} parent=1 // pred_fallthru
      _
    // Predicated region
    $region10: #{tpu_custom_call.1} parent=1 // pred_check
      _
    $region11: #{tpu_custom_call.1} parent=1 // pred_check_branch
      %45 = sbr.rel (0) target = $region13
    $region12: #{tpu_custom_call.1} parent=1 // pred_region
      %s47 = ssub.s32 256, 256
      %48 = vsyncadd [#allocation6], %s47
      %s49 = sshll.u32 [#allocation7], 4
      %s50 = int_to_ptr.vmem [resolvable:$true] %s49
      %55 = dma.hbm_to_vmem [thread:$0]  %s2, 256, %s50, [#allocation6], 128, 128, 8
    $region13: #{tpu_custom_call.1} parent=1 // pred_fallthru
      _
    // Predicated region
    $region14: #{tpu_custom_call.1} parent=1 // pred_check
      _
    $region15: #{tpu_custom_call.1} parent=1 // pred_check_branch
      %57 = sbr.rel (0) target = $region17
    $region16: #{tpu_custom_call.1} parent=1 // pred_region
      %s59 = ssub.s32 512, 512
      %60 = vsyncadd [#allocation9], %s59
      %s61 = sshll.u32 [#allocation8], 4
      %s62 = int_to_ptr.vmem [resolvable:$true] %s61
      %67 = dma.hbm_to_vmem [thread:$0]  %s3, 512, %s62, [#allocation9], 128, 128, 8
    $region17: #{tpu_custom_call.1} parent=1 // pred_fallthru
      _
    // Predicated region
    $region18: #{tpu_custom_call.1} parent=1 // pred_check
      _
    $region19: #{tpu_custom_call.1} parent=1 // pred_check_branch
      %69 = sbr.rel (0) target = $region21
    $region20: #{tpu_custom_call.1} parent=1 // pred_region
      %s71 = ssub.s32 512, 512
      %72 = vsyncadd [#allocation9], %s71
      %s73 = sshll.u32 [#allocation10], 4
      %s74 = int_to_ptr.vmem [resolvable:$true] %s73
      %79 = dma.hbm_to_vmem [thread:$0]  %s4, 512, %s74, [#allocation9], 128, 128, 8
    $region21: #{tpu_custom_call.1} parent=1 // pred_fallthru
      _
    // Predicated region
    $region22: #{tpu_custom_call.1} parent=1 // pred_check
      _
    $region23: #{tpu_custom_call.1} parent=1 // pred_check_branch
      %81 = sbr.rel (0) target = $region25
    $region24: #{tpu_custom_call.1} parent=1 // pred_region
      %s83 = ssub.s32 512, 512
      %84 = vsyncadd [#allocation12], %s83
      %s85 = sshll.u32 [#allocation11], 4
      %s86 = int_to_ptr.vmem [resolvable:$true] %s85
      %91 = dma.hbm_to_vmem [thread:$0]  %s5, 512, %s86, [#allocation12], 128, 128, 8
    $region25: #{tpu_custom_call.1} parent=1 // pred_fallthru
      _
    // Predicated region
    $region26: #{tpu_custom_call.1} parent=1 // pred_check
      _
    $region27: #{tpu_custom_call.1} parent=1 // pred_check_branch
      %93 = sbr.rel (0) target = $region29
    $region28: #{tpu_custom_call.1} parent=1 // pred_region
      %94 = dma.done [#allocation3], 256
    $region29: #{tpu_custom_call.1} parent=1 // pred_fallthru
      _
    // Predicated region
    $region30: #{tpu_custom_call.1} parent=1 // pred_check
      _
    $region31: #{tpu_custom_call.1} parent=1 // pred_check_branch
      %96 = sbr.rel (0) target = $region33
    $region32: #{tpu_custom_call.1} parent=1 // pred_region
      %97 = dma.done [#allocation6], 256
    $region33: #{tpu_custom_call.1} parent=1 // pred_fallthru
      _
    // Predicated region
    $region34: #{tpu_custom_call.1} parent=1 // pred_check
      _
    $region35: #{tpu_custom_call.1} parent=1 // pred_check_branch
      %99 = sbr.rel (0) target = $region37
    $region36: #{tpu_custom_call.1} parent=1 // pred_region
      %100 = dma.done [#allocation6], 256
    $region37: #{tpu_custom_call.1} parent=1 // pred_fallthru
      _
    // Predicated region
    $region38: #{tpu_custom_call.1} parent=1 // pred_check
      _
    $region39: #{tpu_custom_call.1} parent=1 // pred_check_branch
      %102 = sbr.rel (0) target = $region41
    $region40: #{tpu_custom_call.1} parent=1 // pred_region
      %103 = dma.done [#allocation9], 512
    $region41: #{tpu_custom_call.1} parent=1 // pred_fallthru
      _
    // Predicated region
    $region42: #{tpu_custom_call.1} parent=1 // pred_check
      _
    $region43: #{tpu_custom_call.1} parent=1 // pred_check_branch
      %105 = sbr.rel (0) target = $region45
    $region44: #{tpu_custom_call.1} parent=1 // pred_region
      %106 = dma.done [#allocation9], 512
    $region45: #{tpu_custom_call.1} parent=1 // pred_fallthru
      _
    // Predicated region
    $region46: #{tpu_custom_call.1} parent=1 // pred_check
      _
    $region47: #{tpu_custom_call.1} parent=1 // pred_check_branch
      %108 = sbr.rel (0) target = $region49
    $region48: #{tpu_custom_call.1} parent=1 // pred_region
      %109 = dma.done [#allocation12], 512
    $region49: #{tpu_custom_call.1} parent=1 // pred_fallthru
      _
    %v110 = vld [vmem:[#allocation2] sm:$0xff]
    %v111 = vld [vmem:[#allocation2 + $0x8] sm:$0xff]
    %v112 = vld [vmem:[#allocation8] sm:$0xff]
    %v113 = vld [vmem:[#allocation8 + $0x8] sm:$0xff]
    %v114 = vld [vmem:[#allocation8 + $0x10] sm:$0xff]
    %v115 = vld [vmem:[#allocation8 + $0x18] sm:$0xff]
    %vm116 = vcmask 261120
    %v118 = vsel %vm116, %v110, 0
    %v121 = vsel %vm116, %v111, 0
    %123 = vmatprep.subr.mxu0 0.0
    %124 = vmatpush1.msra.mxu0 %v112
    %125 = vmatprep.subr.mxu0 0.0
    %126 = vmatpush1.msra.mxu0 %v113
    %127 = vmatprep.subr.mxu0 0.0
    %128 = vmatpush1.msra.mxu0 %v114
    %129 = vmatprep.subr.mxu0 0.0
    %130 = vmatpush1.msra.mxu0 %v115
    %131 = vmatprep.subr.mxu0 0.0
    %132 = vmatpush1.msra.mxu0 0.0
    %133 = vmatprep.subr.mxu0 0.0
    %134 = vmatpush1.msra.mxu0 0.0
    %135 = vmatprep.subr.mxu0 0.0
    %136 = vmatpush1.msra.mxu0 0.0
    %137 = vmatprep.subr.mxu0 0.0
    %138 = vmatpush1.msra.mxu0 0.0
    %139 = vmatprep.subr.mxu0 0.0
    %140 = vmatpush1.msra.mxu0 0.0
    %141 = vmatprep.subr.mxu0 0.0
    %142 = vmatpush1.msra.mxu0 0.0
    %143 = vmatprep.subr.mxu0 0.0
    %144 = vmatpush1.msra.mxu0 0.0
    %145 = vmatprep.subr.mxu0 0.0
    %146 = vmatpush1.msra.mxu0 0.0
    %147 = vmatprep.subr.mxu0 0.0
    %148 = vmatpush1.msra.mxu0 0.0
    %149 = vmatprep.subr.mxu0 0.0
    %150 = vmatpush1.msra.mxu0 0.0
    %151 = vmatprep.subr.mxu0 0.0
    %152 = vmatpush1.msra.mxu0 0.0
    %153 = vmatprep.subr.mxu0 0.0
    %154 = vmatpush1.msra.mxu0 0.0
    %155 = vmatprep.subr.mxu0 0.0
    %156 = vmatpush1.msra.mxu0 0.0
    %157 = vmatprep.subr.mxu0 0.0
    %158 = vmatpush1.msra.mxu0 0.0
    %159 = vmatprep.subr.mxu0 0.0
    %160 = vmatpush1.msra.mxu0 0.0
    %161 = vmatprep.subr.mxu0 0.0
    %162 = vmatpush1.msra.mxu0 0.0
    %163 = vmatprep.subr.mxu0 0.0
    %164 = vmatpush1.msra.mxu0 0.0
    %165 = vmatprep.subr.mxu0 0.0
    %166 = vmatpush1.msra.mxu0 0.0
    %167 = vmatprep.subr.mxu0 0.0
    %168 = vmatpush1.msra.mxu0 0.0
    %169 = vmatprep.subr.mxu0 0.0
    %170 = vmatpush1.msra.mxu0 0.0
    %171 = vmatprep.subr.mxu0 0.0
    %172 = vmatpush1.msra.mxu0 0.0
    %173 = vmatprep.subr.mxu0 0.0
    %174 = vmatpush1.msra.mxu0 0.0
    %175 = vmatprep.subr.mxu0 0.0
    %176 = vmatpush1.msra.mxu0 0.0
    %177 = vmatprep.subr.mxu0 0.0
    %178 = vmatpush1.msra.mxu0 0.0
    %179 = vmatprep.subr.mxu0 0.0
    %180 = vmatpush1.msra.mxu0 0.0
    %181 = vmatprep.subr.mxu0 0.0
    %182 = vmatpush1.msra.mxu0 0.0
    %183 = vmatprep.subr.mxu0 0.0
    %184 = vmatpush1.msra.mxu0 0.0
    %185 = vmatprep.subr.mxu0 0.0
    %186 = vmatpush1.msra.mxu0 0.0
    %187 = vmatprep.mubr.f32.mxu0 0.0
    %188 = vmatmul.mubr.f32.gmra.mrb[0].mxu0 %v118
    %v189 = vpop.f32.mrb[0].mxu0
    %v190 = vadd.f32 0.0, %v189
    %v191 = vpop.f32.mrb[0].mxu0
    %192 = vmatprep.mubr.f32.mxu0 0.0
    %193 = vmatmul.mubr.f32.gmra.mrb[0].mxu0 %v121
    %v194 = vpop.f32.mrb[0].mxu0
    %v195 = vadd.f32 0.0, %v194
    %v196 = vpop.f32.mrb[0].mxu0
    %197 = vdwg.mxu0
    %vm198 = vcmask 523264
    %199 = vst.msk [vmem:[#allocation13] sm:$0xff] %vm198, %v190
    %200 = vst.msk [vmem:[#allocation13 + $0x8] sm:$0xff] %vm198, %v195
    %v201 = vld [vmem:[#allocation5] sm:$0xff]
    %v202 = vld [vmem:[#allocation5 + $0x8] sm:$0xff]
    %v203 = vld [vmem:[#allocation10] sm:$0xff]
    %v204 = vld [vmem:[#allocation10 + $0x8] sm:$0xff]
    %v205 = vld [vmem:[#allocation10 + $0x10] sm:$0xff]
    %v206 = vld [vmem:[#allocation10 + $0x18] sm:$0xff]
    %v208 = vsel %vm116, %v201, 0
    %v211 = vsel %vm116, %v202, 0
    %213 = vmatprep.subr.mxu0 0.0
    %214 = vmatpush1.msra.mxu0 %v203
    %215 = vmatprep.subr.mxu0 0.0
    %216 = vmatpush1.msra.mxu0 %v204
    %217 = vmatprep.subr.mxu0 0.0
    %218 = vmatpush1.msra.mxu0 %v205
    %219 = vmatprep.subr.mxu0 0.0
    %220 = vmatpush1.msra.mxu0 %v206
    %221 = vmatprep.subr.mxu0 0.0
    %222 = vmatpush1.msra.mxu0 0.0
    %223 = vmatprep.subr.mxu0 0.0
    %224 = vmatpush1.msra.mxu0 0.0
    %225 = vmatprep.subr.mxu0 0.0
    %226 = vmatpush1.msra.mxu0 0.0
    %227 = vmatprep.subr.mxu0 0.0
    %228 = vmatpush1.msra.mxu0 0.0
    %229 = vmatprep.subr.mxu0 0.0
    %230 = vmatpush1.msra.mxu0 0.0
    %231 = vmatprep.subr.mxu0 0.0
    %232 = vmatpush1.msra.mxu0 0.0
    %233 = vmatprep.subr.mxu0 0.0
    %234 = vmatpush1.msra.mxu0 0.0
    %235 = vmatprep.subr.mxu0 0.0
    %236 = vmatpush1.msra.mxu0 0.0
    %237 = vmatprep.subr.mxu0 0.0
    %238 = vmatpush1.msra.mxu0 0.0
    %239 = vmatprep.subr.mxu0 0.0
    %240 = vmatpush1.msra.mxu0 0.0
    %241 = vmatprep.subr.mxu0 0.0
    %242 = vmatpush1.msra.mxu0 0.0
    %243 = vmatprep.subr.mxu0 0.0
    %244 = vmatpush1.msra.mxu0 0.0
    %245 = vmatprep.subr.mxu0 0.0
    %246 = vmatpush1.msra.mxu0 0.0
    %247 = vmatprep.subr.mxu0 0.0
    %248 = vmatpush1.msra.mxu0 0.0
    %249 = vmatprep.subr.mxu0 0.0
    %250 = vmatpush1.msra.mxu0 0.0
    %251 = vmatprep.subr.mxu0 0.0
    %252 = vmatpush1.msra.mxu0 0.0
    %253 = vmatprep.subr.mxu0 0.0
    %254 = vmatpush1.msra.mxu0 0.0
    %255 = vmatprep.subr.mxu0 0.0
    %256 = vmatpush1.msra.mxu0 0.0
    %257 = vmatprep.subr.mxu0 0.0
    %258 = vmatpush1.msra.mxu0 0.0
    %259 = vmatprep.subr.mxu0 0.0
    %260 = vmatpush1.msra.mxu0 0.0
    %261 = vmatprep.subr.mxu0 0.0
    %262 = vmatpush1.msra.mxu0 0.0
    %263 = vmatprep.subr.mxu0 0.0
    %264 = vmatpush1.msra.mxu0 0.0
    %265 = vmatprep.subr.mxu0 0.0
    %266 = vmatpush1.msra.mxu0 0.0
    %267 = vmatprep.subr.mxu0 0.0
    %268 = vmatpush1.msra.mxu0 0.0
    %269 = vmatprep.subr.mxu0 0.0
    %270 = vmatpush1.msra.mxu0 0.0
    %271 = vmatprep.subr.mxu0 0.0
    %272 = vmatpush1.msra.mxu0 0.0
    %273 = vmatprep.subr.mxu0 0.0
    %274 = vmatpush1.msra.mxu0 0.0
    %275 = vmatprep.subr.mxu0 0.0
    %276 = vmatpush1.msra.mxu0 0.0
    %277 = vmatprep.mubr.f32.mxu0 0.0
    %278 = vmatmul.mubr.f32.gmra.mrb[0].mxu0 %v208
    %v279 = vpop.f32.mrb[0].mxu0
    %v280 = vadd.f32 0.0, %v279
    %v281 = vpop.f32.mrb[0].mxu0
    %282 = vmatprep.mubr.f32.mxu0 0.0
    %283 = vmatmul.mubr.f32.gmra.mrb[0].mxu0 %v211
    %v284 = vpop.f32.mrb[0].mxu0
    %v285 = vadd.f32 0.0, %v284
    %v286 = vpop.f32.mrb[0].mxu0
    %287 = vdwg.mxu0
    %288 = vst.msk [vmem:[#allocation14] sm:$0xff] %vm198, %v280
    %289 = vst.msk [vmem:[#allocation14 + $0x8] sm:$0xff] %vm198, %v285
    %v290 = vld [vmem:[#allocation7] sm:$0xff]
    %v291 = vld [vmem:[#allocation7 + $0x8] sm:$0xff]
    %v292 = vld [vmem:[#allocation11] sm:$0xff]
    %v293 = vld [vmem:[#allocation11 + $0x8] sm:$0xff]
    %v294 = vld [vmem:[#allocation11 + $0x10] sm:$0xff]
    %v295 = vld [vmem:[#allocation11 + $0x18] sm:$0xff]
    %v297 = vsel %vm116, %v290, 0
    %v300 = vsel %vm116, %v291, 0
    %302 = vmatprep.subr.mxu0 0.0
    %303 = vmatpush1.msra.mxu0 %v292
    %304 = vmatprep.subr.mxu0 0.0
    %305 = vmatpush1.msra.mxu0 %v293
    %306 = vmatprep.subr.mxu0 0.0
    %307 = vmatpush1.msra.mxu0 %v294
    %308 = vmatprep.subr.mxu0 0.0
    %309 = vmatpush1.msra.mxu0 %v295
    %310 = vmatprep.subr.mxu0 0.0
    %311 = vmatpush1.msra.mxu0 0.0
    %312 = vmatprep.subr.mxu0 0.0
    %313 = vmatpush1.msra.mxu0 0.0
    %314 = vmatprep.subr.mxu0 0.0
    %315 = vmatpush1.msra.mxu0 0.0
    %316 = vmatprep.subr.mxu0 0.0
    %317 = vmatpush1.msra.mxu0 0.0
    %318 = vmatprep.subr.mxu0 0.0
    %319 = vmatpush1.msra.mxu0 0.0
    %320 = vmatprep.subr.mxu0 0.0
    %321 = vmatpush1.msra.mxu0 0.0
    %322 = vmatprep.subr.mxu0 0.0
    %323 = vmatpush1.msra.mxu0 0.0
    %324 = vmatprep.subr.mxu0 0.0
    %325 = vmatpush1.msra.mxu0 0.0
    %326 = vmatprep.subr.mxu0 0.0
    %327 = vmatpush1.msra.mxu0 0.0
    %328 = vmatprep.subr.mxu0 0.0
    %329 = vmatpush1.msra.mxu0 0.0
    %330 = vmatprep.subr.mxu0 0.0
    %331 = vmatpush1.msra.mxu0 0.0
    %332 = vmatprep.subr.mxu0 0.0
    %333 = vmatpush1.msra.mxu0 0.0
    %334 = vmatprep.subr.mxu0 0.0
    %335 = vmatpush1.msra.mxu0 0.0
    %336 = vmatprep.subr.mxu0 0.0
    %337 = vmatpush1.msra.mxu0 0.0
    %338 = vmatprep.subr.mxu0 0.0
    %339 = vmatpush1.msra.mxu0 0.0
    %340 = vmatprep.subr.mxu0 0.0
    %341 = vmatpush1.msra.mxu0 0.0
    %342 = vmatprep.subr.mxu0 0.0
    %343 = vmatpush1.msra.mxu0 0.0
    %344 = vmatprep.subr.mxu0 0.0
    %345 = vmatpush1.msra.mxu0 0.0
    %346 = vmatprep.subr.mxu0 0.0
    %347 = vmatpush1.msra.mxu0 0.0
    %348 = vmatprep.subr.mxu0 0.0
    %349 = vmatpush1.msra.mxu0 0.0
    %350 = vmatprep.subr.mxu0 0.0
    %351 = vmatpush1.msra.mxu0 0.0
    %352 = vmatprep.subr.mxu0 0.0
    %353 = vmatpush1.msra.mxu0 0.0
    %354 = vmatprep.subr.mxu0 0.0
    %355 = vmatpush1.msra.mxu0 0.0
    %356 = vmatprep.subr.mxu0 0.0
    %357 = vmatpush1.msra.mxu0 0.0
    %358 = vmatprep.subr.mxu0 0.0
    %359 = vmatpush1.msra.mxu0 0.0
    %360 = vmatprep.subr.mxu0 0.0
    %361 = vmatpush1.msra.mxu0 0.0
    %362 = vmatprep.subr.mxu0 0.0
    %363 = vmatpush1.msra.mxu0 0.0
    %364 = vmatprep.subr.mxu0 0.0
    %365 = vmatpush1.msra.mxu0 0.0
    %366 = vmatprep.mubr.f32.mxu0 0.0
    %367 = vmatmul.mubr.f32.gmra.mrb[0].mxu0 %v297
    %v368 = vpop.f32.mrb[0].mxu0
    %v369 = vadd.f32 0.0, %v368
    %v370 = vpop.f32.mrb[0].mxu0
    %371 = vmatprep.mubr.f32.mxu0 0.0
    %372 = vmatmul.mubr.f32.gmra.mrb[0].mxu0 %v300
    %v373 = vpop.f32.mrb[0].mxu0
    %v374 = vadd.f32 0.0, %v373
    %v375 = vpop.f32.mrb[0].mxu0
    %376 = vdwg.mxu0
    %377 = vst.msk [vmem:[#allocation16] sm:$0xff] %vm198, %v369
    %378 = vst.msk [vmem:[#allocation16 + $0x8] sm:$0xff] %vm198, %v374
    // Predicated region
    $region50: #{tpu_custom_call.1} parent=1 // pred_check
      _
    $region51: #{tpu_custom_call.1} parent=1 // pred_check_branch
      %380 = sbr.rel (0) target = $region53
    $region52: #{tpu_custom_call.1} parent=1 // pred_region
      %s382 = ssub.s32 256, 256
      %383 = vsyncadd [#allocation4], %s382
      %s384 = sshll.u32 [#allocation13], 4
      %s385 = int_to_ptr.vmem [resolvable:$true] %s384
      %390 = dma.vmem_to_hbm [thread:$0]  %s385, 256, %s6, [#allocation4], 128, 128, 8
    $region53: #{tpu_custom_call.1} parent=1 // pred_fallthru
      _
    // Predicated region
    $region54: #{tpu_custom_call.1} parent=1 // pred_check
      _
    $region55: #{tpu_custom_call.1} parent=1 // pred_check_branch
      %392 = sbr.rel (0) target = $region57
    $region56: #{tpu_custom_call.1} parent=1 // pred_region
      %s394 = ssub.s32 256, 256
      %395 = vsyncadd [#allocation15], %s394
      %s396 = sshll.u32 [#allocation14], 4
      %s397 = int_to_ptr.vmem [resolvable:$true] %s396
      %402 = dma.vmem_to_hbm [thread:$0]  %s397, 256, %s7, [#allocation15], 128, 128, 8
    $region57: #{tpu_custom_call.1} parent=1 // pred_fallthru
      _
    // Predicated region
    $region58: #{tpu_custom_call.1} parent=1 // pred_check
      _
    $region59: #{tpu_custom_call.1} parent=1 // pred_check_branch
      %404 = sbr.rel (0) target = $region61
    $region60: #{tpu_custom_call.1} parent=1 // pred_region
      %s406 = ssub.s32 256, 256
      %407 = vsyncadd [#allocation15], %s406
      %s408 = sshll.u32 [#allocation16], 4
      %s409 = int_to_ptr.vmem [resolvable:$true] %s408
      %414 = dma.vmem_to_hbm [thread:$0]  %s409, 256, %s8, [#allocation15], 128, 128, 8
    $region61: #{tpu_custom_call.1} parent=1 // pred_fallthru
      _
    // Predicated region
    $region62: #{tpu_custom_call.1} parent=1 // pred_check
      _
    $region63: #{tpu_custom_call.1} parent=1 // pred_check_branch
      %416 = sbr.rel (0) target = $region65
    $region64: #{tpu_custom_call.1} parent=1 // pred_region
      %417 = dma.done [#allocation4], 256
    $region65: #{tpu_custom_call.1} parent=1 // pred_fallthru
      _
    // Predicated region
    $region66: #{tpu_custom_call.1} parent=1 // pred_check
      _
    $region67: #{tpu_custom_call.1} parent=1 // pred_check_branch
      %419 = sbr.rel (0) target = $region69
    $region68: #{tpu_custom_call.1} parent=1 // pred_region
      %420 = dma.done [#allocation15], 256
    $region69: #{tpu_custom_call.1} parent=1 // pred_fallthru
      _
    // Predicated region
    $region70: #{tpu_custom_call.1} parent=1 // pred_check
      _
    $region71: #{tpu_custom_call.1} parent=1 // pred_check_branch
      %422 = sbr.rel (0) target = $region73
    $region72: #{tpu_custom_call.1} parent=1 // pred_region
      %423 = dma.done [#allocation15], 256
    $region73: #{tpu_custom_call.1} parent=1 // pred_fallthru
      _
    %424 = vsyncpa [#allocation3], 1
    %425 = vsyncpa [#allocation6], 1
    %426 = vsyncpa [#allocation9], 1
    %427 = vsyncpa [#allocation12], 1
    %428 = vsyncpa [#allocation4], 1
    %429 = vsyncpa [#allocation15], 1

</llo_original>
